<compile_context>
chip_gen: v5e
topology: v5e:2x2
jax: 0.10.0
libtpu: 0.0.40
codegen_flags: <defaults>
</compile_context>

<pallas_src>
import functools

import jax
import jax.numpy as jnp
from jax.experimental import pallas as pl
from jax.experimental.pallas import tpu as pltpu

IN_DIM = 32 + 3 * 256   # 800
HID_DIM = 256
OUT_DIM = 3
PAD_OUT = 128           # lane-dense padded class dimension for the 2nd MXU GEMM
STORE_OUT = 8           # narrow HBM output width (only first 3 lanes are real)
NEG_BIG = -1e30         # finite "minus infinity" for padded logits -> exp == 0


def _round_up(x, m):
    return ((x + m - 1) // m) * m


def _controller_kernel(x_ref, w1_ref, b1_ref, w2_ref, b2_ref, o_ref):
    # In-kernel f32 -> bf16 cast of x (VPU pack hides under DMA/MXU); avoids a
    # separate wrapper-side cast pass over HBM.
    x_bf = x_ref[...].astype(jnp.bfloat16)
    # First GEMM: bf16 MXU operands, f32 accumulation.
    h = jnp.dot(x_bf, w1_ref[...], preferred_element_type=jnp.float32)
    h = jnp.maximum(h + b1_ref[...], 0.0)                      # f32 bias + ReLU
    # Second GEMM at lane-dense width 128 (padded class columns).
    logits = jnp.dot(h.astype(jnp.bfloat16), w2_ref[...],
                     preferred_element_type=jnp.float32) + b2_ref[...]
    # Numerically stable softmax over the (padded) class axis.  Padded lanes
    # have bias -1e30 so they contribute exp(...) == 0 to the denominator.
    m = jnp.max(logits, axis=1, keepdims=True)
    e = jnp.exp(logits - m)
    denom = jnp.sum(e, axis=1, keepdims=True)
    # Store only the narrow (lane 0..7) slab; exact division -> rows sum to 1.
    o_ref[...] = (e[:, :o_ref.shape[1]] / denom).astype(o_ref.dtype)


@functools.partial(jax.jit, static_argnames="batch_tile")
def controller_forward(x, w1, b1, w2, b2, *, batch_tile=2048):
    """x: (B, 800) f32, params as produced by init_params -> (B, 3) f32 softmax."""
    B = x.shape[0]
    # Batch tile: big enough to amortize per-step pipeline overhead, but small
    # enough that mid/large batches get >= 2 grid steps (v7x has 2 TensorCores).
    TB = min(batch_tile, _round_up(pl.cdiv(B, 2), 8))
    if B < 8:
        # Tiny-batch fallback: pad up to one 8-row sublane tile (negligible).
        x = jnp.pad(x, ((0, 8 - B), (0, 0)))
        TB = 8
    grid = (pl.cdiv(x.shape[0], TB),)

    # Resident weights: bf16 MXU operands; class dim padded 3 -> 128 so the
    # second matmul stays lane-dense (padded bias -1e30 => zero probability).
    w1_bf = w1.astype(jnp.bfloat16)
    b1_f = b1.reshape(1, HID_DIM).astype(jnp.float32)
    w2_pad = jnp.zeros((HID_DIM, PAD_OUT), jnp.bfloat16).at[:, :OUT_DIM].set(
        w2.astype(jnp.bfloat16))
    b2_pad = jnp.full((1, PAD_OUT), NEG_BIG, jnp.float32).at[:, :OUT_DIM].set(
        b2.reshape(1, OUT_DIM).astype(jnp.float32))

    out = pl.pallas_call(
        _controller_kernel,
        out_shape=jax.ShapeDtypeStruct((x.shape[0], STORE_OUT), jnp.float32),
        grid=grid,
        in_specs=[
            pl.BlockSpec((TB, IN_DIM), lambda i: (i, 0)),        # x: batch-tiled f32
            pl.BlockSpec((IN_DIM, HID_DIM), lambda i: (0, 0)),   # w1: resident
            pl.BlockSpec((1, HID_DIM), lambda i: (0, 0)),        # b1: resident
            pl.BlockSpec((HID_DIM, PAD_OUT), lambda i: (0, 0)),  # w2: resident
            pl.BlockSpec((1, PAD_OUT), lambda i: (0, 0)),        # b2: resident
        ],
        out_specs=pl.BlockSpec((TB, STORE_OUT), lambda i: (i, 0)),
        compiler_params=pltpu.CompilerParams(
            dimension_semantics=("parallel",),
            vmem_limit_bytes=48 * 1024 * 1024,   # f32 x tiles (2048x800) double-buffered
        ),
    )(x, w1_bf, b1_f, w2_pad, b2_pad)

    return out[:B, :OUT_DIM]


def init_params(key):
    """PyTorch nn.Linear default init: U[-1/sqrt(fan_in), 1/sqrt(fan_in)]."""
    k1, k2, k3, k4 = jax.random.split(key, 4)
    bound1 = 1.0 / jnp.sqrt(IN_DIM)
    bound2 = 1.0 / jnp.sqrt(HID_DIM)
    # Stored as (in, out) so the kernel computes x @ W (== PyTorch x @ W.T).
    w1 = jax.random.uniform(k1, (IN_DIM, HID_DIM), jnp.float32, -bound1, bound1)
    b1 = jax.random.uniform(k2, (1, HID_DIM), jnp.float32, -bound1, bound1)
    w2 = jax.random.uniform(k3, (HID_DIM, OUT_DIM), jnp.float32, -bound2, bound2)
    b2 = jax.random.uniform(k4, (1, OUT_DIM), jnp.float32, -bound2, bound2)
    return w1, b1, w2, b2


def _reference(x, w1, b1, w2, b2):
    """Pure-JAX reference using the same bf16-rounded matmul operands."""
    xb = x.astype(jnp.bfloat16).astype(jnp.float32)
    w1b = w1.astype(jnp.bfloat16).astype(jnp.float32)
    w2b = w2.astype(jnp.bfloat16).astype(jnp.float32)
    h = jnp.maximum(xb @ w1b + b1, 0.0)
    hb = h.astype(jnp.bfloat16).astype(jnp.float32)
    logits = hb @ w2b + b2
    return jax.nn.softmax(logits, axis=1)


if __name__ == "__main__":
    key = jax.random.PRNGKey(0)
    kx, kp = jax.random.split(key)

    B = 2
    x = jax.random.normal(kx, (B, IN_DIM), jnp.float32)
    w1, b1, w2, b2 = init_params(kp)

    out = jax.block_until_ready(controller_forward(x, w1, b1, w2, b2))

    assert out.shape == (B, OUT_DIM)

    # Softmax rows sum to 1 (exact reciprocal -> f32 precision).
    row_sums = jnp.sum(out, axis=1)
    assert bool(jnp.all(jnp.abs(row_sums - 1.0) < 1e-3)), row_sums

    # Match a pure-JAX reference built from the same bf16-rounded operands.
    ref = _reference(x, w1, b1, w2, b2)
    assert bool(jnp.all(jnp.abs(out - ref) < 5e-3)), jnp.max(jnp.abs(out - ref))

    print("KERNEL_OK")
</pallas_src>

<mosaic_0001>
module attributes {stable_mosaic.version = 11 : i64} {
  func.func @_controller_kernel(%arg0: i32, %arg1: memref<8x800xf32, #tpu.memory_space<vmem>>, %arg2: memref<800x256xbf16, #tpu.memory_space<vmem>>, %arg3: memref<1x256xf32, #tpu.memory_space<vmem>>, %arg4: memref<256x128xbf16, #tpu.memory_space<vmem>>, %arg5: memref<1x128xf32, #tpu.memory_space<vmem>>, %arg6: memref<8x8xf32, #tpu.memory_space<vmem>>) attributes {dimension_semantics = [#tpu.dimension_semantics<parallel>], iteration_bounds = array<i64: 1>, scalar_prefetch = 0 : i64, scratch_operands = 0 : i64, tpu.core_type = #tpu.core_type<tc>, window_params = [{transform_indices = @transform_0, window_bounds = array<i64: 8, 800>}, {pipeline_mode = #tpu.pipeline_mode<synchronous>, transform_indices = @transform_1, window_bounds = array<i64: 800, 256>}, {pipeline_mode = #tpu.pipeline_mode<synchronous>, transform_indices = @transform_2, window_bounds = array<i64: 1, 256>}, {pipeline_mode = #tpu.pipeline_mode<synchronous>, transform_indices = @transform_3, window_bounds = array<i64: 256, 128>}, {pipeline_mode = #tpu.pipeline_mode<synchronous>, transform_indices = @transform_4, window_bounds = array<i64: 1, 128>}, {transform_indices = @transform_5, window_bounds = array<i64: 8, 8>}]} {
    %c0 = arith.constant 0 : index
    %c0_0 = arith.constant 0 : index
    %0 = vector.load %arg1[%c0, %c0_0] : memref<8x800xf32, #tpu.memory_space<vmem>>, vector<8x800xf32>
    %1 = arith.truncf %0 : vector<8x800xf32> to vector<8x800xbf16>
    %c0_1 = arith.constant 0 : index
    %c0_2 = arith.constant 0 : index
    %2 = vector.load %arg2[%c0_1, %c0_2] : memref<800x256xbf16, #tpu.memory_space<vmem>>, vector<800x256xbf16>
    %cst = arith.constant dense<0.000000e+00> : vector<8x256xf32>
    %3 = tpu.matmul %1, %2, %cst {dimension_numbers = #tpu.dot_dimension_numbers<[1], [0], [0], [1], [0, 0, 1, 1], [], []>} : vector<8x800xbf16>, vector<800x256xbf16>, vector<8x256xf32> -> vector<8x256xf32>
    %c0_3 = arith.constant 0 : index
    %c0_4 = arith.constant 0 : index
    %4 = vector.load %arg3[%c0_3, %c0_4] : memref<1x256xf32, #tpu.memory_space<vmem>>, vector<1x256xf32>
    %5 = vector.broadcast %4 : vector<1x256xf32> to vector<8x256xf32>
    %6 = arith.addf %3, %5 : vector<8x256xf32>
    %cst_5 = arith.constant 0.000000e+00 : f32
    %7 = vector.broadcast %cst_5 : f32 to vector<8x256xf32>
    %8 = arith.maximumf %6, %7 : vector<8x256xf32>
    %9 = arith.truncf %8 : vector<8x256xf32> to vector<8x256xbf16>
    %c0_6 = arith.constant 0 : index
    %c0_7 = arith.constant 0 : index
    %10 = vector.load %arg4[%c0_6, %c0_7] : memref<256x128xbf16, #tpu.memory_space<vmem>>, vector<256x128xbf16>
    %cst_8 = arith.constant dense<0.000000e+00> : vector<8x128xf32>
    %11 = tpu.matmul %9, %10, %cst_8 {dimension_numbers = #tpu.dot_dimension_numbers<[1], [0], [0], [1], [0, 0, 1, 1], [], []>} : vector<8x256xbf16>, vector<256x128xbf16>, vector<8x128xf32> -> vector<8x128xf32>
    %c0_9 = arith.constant 0 : index
    %c0_10 = arith.constant 0 : index
    %12 = vector.load %arg5[%c0_9, %c0_10] : memref<1x128xf32, #tpu.memory_space<vmem>>, vector<1x128xf32>
    %13 = vector.broadcast %12 : vector<1x128xf32> to vector<8x128xf32>
    %14 = arith.addf %11, %13 : vector<8x128xf32>
    %cst_11 = arith.constant dense<0xFF800000> : vector<8xf32>
    %15 = vector.multi_reduction <maximumf>, %14, %cst_11 [1] : vector<8x128xf32> to vector<8xf32>
    %16 = vector.shape_cast %15 : vector<8xf32> to vector<8x1xf32>
    %17 = vector.broadcast %16 : vector<8x1xf32> to vector<8x128xf32>
    %18 = arith.subf %14, %17 : vector<8x128xf32>
    %19 = math.exp %18 : vector<8x128xf32>
    %cst_12 = arith.constant dense<0.000000e+00> : vector<8xf32>
    %20 = vector.multi_reduction <add>, %19, %cst_12 [1] : vector<8x128xf32> to vector<8xf32>
    %21 = vector.shape_cast %20 : vector<8xf32> to vector<8x1xf32>
    %22 = vector.extract_strided_slice %19 {offsets = [0, 0], sizes = [8, 8], strides = [1, 1]} : vector<8x128xf32> to vector<8x8xf32>
    %23 = vector.broadcast %21 : vector<8x1xf32> to vector<8x8xf32>
    %24 = arith.divf %22, %23 : vector<8x8xf32>
    %c0_13 = arith.constant 0 : index
    %c0_14 = arith.constant 0 : index
    %25 = vector.load %arg6[%c0_13, %c0_14] : memref<8x8xf32, #tpu.memory_space<vmem>>, vector<8x8xf32>
    tpu.vector_store %arg6[%c0_13, %c0_14], %24 {strides = array<i32>} : memref<8x8xf32, #tpu.memory_space<vmem>>, vector<8x8xf32>,
    return
  }
  func.func @transform_0(%arg0: i32) -> (i32, i32) {
    %c0_i32 = arith.constant 0 : i32
    %c0_i32_0 = arith.constant 0 : i32
    return %arg0, %c0_i32 : i32, i32
  }
  func.func @transform_1(%arg0: i32) -> (i32, i32) {
    %c0_i32 = arith.constant 0 : i32
    %c0_i32_0 = arith.constant 0 : i32
    %c0_i32_1 = arith.constant 0 : i32
    return %c0_i32, %c0_i32_0 : i32, i32
  }
  func.func @transform_2(%arg0: i32) -> (i32, i32) {
    %c0_i32 = arith.constant 0 : i32
    %c0_i32_0 = arith.constant 0 : i32
    %c0_i32_1 = arith.constant 0 : i32
    return %c0_i32, %c0_i32_0 : i32, i32
  }
  func.func @transform_3(%arg0: i32) -> (i32, i32) {
    %c0_i32 = arith.constant 0 : i32
    %c0_i32_0 = arith.constant 0 : i32
    %c0_i32_1 = arith.constant 0 : i32
    return %c0_i32, %c0_i32_0 : i32, i32
  }
  func.func @transform_4(%arg0: i32) -> (i32, i32) {
    %c0_i32 = arith.constant 0 : i32
    %c0_i32_0 = arith.constant 0 : i32
    %c0_i32_1 = arith.constant 0 : i32
    return %c0_i32, %c0_i32_0 : i32, i32
  }
  func.func @transform_5(%arg0: i32) -> (i32, i32) {
    %c0_i32 = arith.constant 0 : i32
    %c0_i32_0 = arith.constant 0 : i32
    return %arg0, %c0_i32 : i32, i32
  }
}

</mosaic_0001>

<llo_original>
// kernel: controller_forward.1
$region0: #{controller_forward.1}
  #allocation0 [shape = 'u32[]', space=smem, size = 0x4, offset = 0x4, fixed_abs, tag = 'smem constant byte address 0x4 - core index']
  #allocation1 [shape = 'u32[72,128]{1,0:T(1,128)}', space=vmem, size = 0x9000, scoped, tag = 'internal scratch']
  %s0 = inlined_call_operand.vmem [shape: f32[8,800], index: 0, kind: input, shape index: {}]
  %s1 = inlined_call_operand.vmem [shape: bf16[800,256], index: 1, kind: input, shape index: {}]
  %s2 = inlined_call_operand.vmem [shape: f32[1,256], index: 2, kind: input, shape index: {}]
  %s3 = inlined_call_operand.vmem [shape: bf16[256,128], index: 3, kind: input, shape index: {}]
  %s4 = inlined_call_operand.vmem [shape: f32[1,128], index: 4, kind: input, shape index: {}]
  %s5 = inlined_call_operand.vmem [shape: f32[8,8], index: 5, kind: output, shape index: {}]
  %s6 = sld [smem:[#allocation0]]
  $region30: #{controller_forward.1} parent=0
    _
  %s8 = ssub.s32 1, %s6
  %s9 = scalar_select 0, %s8, %s6
  // Predicated region
  $region2: #{controller_forward.1} parent=0 // pred_check
    _
  $region3: #{controller_forward.1} parent=0 // pred_check_branch
    %11 = sbr.rel (0) target = $region5
  $region4: #{controller_forward.1} parent=0 // pred_region
    _
  $region5: #{controller_forward.1} parent=0 // pred_fallthru
    _
  // Predicated region
  $region6: #{controller_forward.1} parent=0 // pred_check
    _
  $region7: #{controller_forward.1} parent=0 // pred_check_branch
    %13 = sbr.rel (0) target = $region9
  $region8: #{controller_forward.1} parent=0 // pred_region
    _
  $region9: #{controller_forward.1} parent=0 // pred_fallthru
    _
  // Predicated region
  $region10: #{controller_forward.1} parent=0 // pred_check
    _
  $region11: #{controller_forward.1} parent=0 // pred_check_branch
    %15 = sbr.rel (0) target = $region13
  $region12: #{controller_forward.1} parent=0 // pred_region
    _
  $region13: #{controller_forward.1} parent=0 // pred_fallthru
    _
  // Predicated region
  $region14: #{controller_forward.1} parent=0 // pred_check
    _
  $region15: #{controller_forward.1} parent=0 // pred_check_branch
    %17 = sbr.rel (0) target = $region17
  $region16: #{controller_forward.1} parent=0 // pred_region
    _
  $region17: #{controller_forward.1} parent=0 // pred_fallthru
    _
  // Predicated region
  $region18: #{controller_forward.1} parent=0 // pred_check
    _
  $region19: #{controller_forward.1} parent=0 // pred_check_branch
    %19 = sbr.rel (0) target = $region21
  $region20: #{controller_forward.1} parent=0 // pred_region
    _
  $region21: #{controller_forward.1} parent=0 // pred_fallthru
    _
  %v21 = vld [vmem:[%s0] sm:$0xff]
  %v22 = vld [vmem:[%s0 + $0x8] sm:$0xff]
  %v23 = vld [vmem:[%s0 + $0x10] sm:$0xff]
  %v24 = vld [vmem:[%s0 + $0x18] sm:$0xff]
  %v25 = vld [vmem:[%s0 + $0x20] sm:$0xff]
  %v26 = vld [vmem:[%s0 + $0x28] sm:$0xff]
  %v27 = vld [vmem:[%s0 + $0x30] sm:$0xff]
  %v28 = vpack.c.bf16 %v21, %v21
  %v29 = vpack.c.bf16 %v22, %v22
  %v30 = vpack.c.bf16 %v23, %v23
  %v31 = vpack.c.bf16 %v24, %v24
  %v32 = vpack.c.bf16 %v25, %v25
  %v33 = vpack.c.bf16 %v26, %v26
  %v34 = vpack.c.bf16 %v27, %v27
  %v35 = vld [vmem:[%s1] sm:$0xff]
  %v36 = vld [vmem:[%s1 + $0x8] sm:$0xff]
  %v37 = vld [vmem:[%s1 + $0x10] sm:$0xff]
  %v38 = vld [vmem:[%s1 + $0x18] sm:$0xff]
  %v39 = vld [vmem:[%s1 + $0x20] sm:$0xff]
  %v40 = vld [vmem:[%s1 + $0x28] sm:$0xff]
  %v41 = vld [vmem:[%s1 + $0x30] sm:$0xff]
  %v42 = vld [vmem:[%s1 + $0x38] sm:$0xff]
  %v43 = vld [vmem:[%s1 + $0x40] sm:$0xff]
  %v44 = vld [vmem:[%s1 + $0x48] sm:$0xff]
  %v45 = vld [vmem:[%s1 + $0x50] sm:$0xff]
  %v46 = vld [vmem:[%s1 + $0x58] sm:$0xff]
  %v47 = vld [vmem:[%s1 + $0x60] sm:$0xff]
  %v48 = vld [vmem:[%s1 + $0x68] sm:$0xff]
  %v49 = vld [vmem:[%s1 + $0x70] sm:$0xff]
  %v50 = vld [vmem:[%s1 + $0x78] sm:$0xff]
  %v51 = vld [vmem:[%s1 + $0x80] sm:$0xff]
  %v52 = vld [vmem:[%s1 + $0x88] sm:$0xff]
  %v53 = vld [vmem:[%s1 + $0x90] sm:$0xff]
  %v54 = vld [vmem:[%s1 + $0x98] sm:$0xff]
  %v55 = vld [vmem:[%s1 + $0xa0] sm:$0xff]
  %v56 = vld [vmem:[%s1 + $0xa8] sm:$0xff]
  %v57 = vld [vmem:[%s1 + $0xb0] sm:$0xff]
  %v58 = vld [vmem:[%s1 + $0xb8] sm:$0xff]
  %v59 = vld [vmem:[%s1 + $0xc0] sm:$0xff]
  %v60 = vld [vmem:[%s1 + $0xc8] sm:$0xff]
  %v61 = vld [vmem:[%s1 + $0xd0] sm:$0xff]
  %v62 = vld [vmem:[%s1 + $0xd8] sm:$0xff]
  %v63 = vld [vmem:[%s1 + $0xe0] sm:$0xff]
  %v64 = vld [vmem:[%s1 + $0xe8] sm:$0xff]
  %v65 = vld [vmem:[%s1 + $0xf0] sm:$0xff]
  %v66 = vld [vmem:[%s1 + $0xf8] sm:$0xff]
  %v67 = vld [vmem:[%s1 + $0x100] sm:$0xff]
  %v68 = vld [vmem:[%s1 + $0x108] sm:$0xff]
  %v69 = vld [vmem:[%s1 + $0x110] sm:$0xff]
  %v70 = vld [vmem:[%s1 + $0x118] sm:$0xff]
  %v71 = vld [vmem:[%s1 + $0x120] sm:$0xff]
  %v72 = vld [vmem:[%s1 + $0x128] sm:$0xff]
  %v73 = vld [vmem:[%s1 + $0x130] sm:$0xff]
  %v74 = vld [vmem:[%s1 + $0x138] sm:$0xff]
  %v75 = vld [vmem:[%s1 + $0x140] sm:$0xff]
  %v76 = vld [vmem:[%s1 + $0x148] sm:$0xff]
  %v77 = vld [vmem:[%s1 + $0x150] sm:$0xff]
  %v78 = vld [vmem:[%s1 + $0x158] sm:$0xff]
  %v79 = vld [vmem:[%s1 + $0x160] sm:$0xff]
  %v80 = vld [vmem:[%s1 + $0x168] sm:$0xff]
  %v81 = vld [vmem:[%s1 + $0x170] sm:$0xff]
  %v82 = vld [vmem:[%s1 + $0x178] sm:$0xff]
  %v83 = vld [vmem:[%s1 + $0x180] sm:$0xff]
  %v84 = vld [vmem:[%s1 + $0x188] sm:$0xff]
  %v85 = vld [vmem:[%s1 + $0x190] sm:$0xff]
  %v86 = vld [vmem:[%s1 + $0x198] sm:$0xff]
  %v87 = vld [vmem:[%s1 + $0x1a0] sm:$0xff]
  %v88 = vld [vmem:[%s1 + $0x1a8] sm:$0xff]
  %v89 = vld [vmem:[%s1 + $0x1b0] sm:$0xff]
  %v90 = vld [vmem:[%s1 + $0x1b8] sm:$0xff]
  %v91 = vld [vmem:[%s1 + $0x1c0] sm:$0xff]
  %v92 = vld [vmem:[%s1 + $0x1c8] sm:$0xff]
  %v93 = vld [vmem:[%s1 + $0x1d0] sm:$0xff]
  %v94 = vld [vmem:[%s1 + $0x1d8] sm:$0xff]
  %v95 = vld [vmem:[%s1 + $0x1e0] sm:$0xff]
  %v96 = vld [vmem:[%s1 + $0x1e8] sm:$0xff]
  %v97 = vld [vmem:[%s1 + $0x1f0] sm:$0xff]
  %v98 = vld [vmem:[%s1 + $0x1f8] sm:$0xff]
  %v99 = vld [vmem:[%s1 + $0x200] sm:$0xff]
  %v100 = vld [vmem:[%s1 + $0x208] sm:$0xff]
  %v101 = vld [vmem:[%s1 + $0x210] sm:$0xff]
  %v102 = vld [vmem:[%s1 + $0x218] sm:$0xff]
  %v103 = vld [vmem:[%s1 + $0x220] sm:$0xff]
  %v104 = vld [vmem:[%s1 + $0x228] sm:$0xff]
  %v105 = vld [vmem:[%s1 + $0x230] sm:$0xff]
  %v106 = vld [vmem:[%s1 + $0x238] sm:$0xff]
  %v107 = vld [vmem:[%s1 + $0x240] sm:$0xff]
  %v108 = vld [vmem:[%s1 + $0x248] sm:$0xff]
  %v109 = vld [vmem:[%s1 + $0x250] sm:$0xff]
  %v110 = vld [vmem:[%s1 + $0x258] sm:$0xff]
  %v111 = vld [vmem:[%s1 + $0x260] sm:$0xff]
  %v112 = vld [vmem:[%s1 + $0x268] sm:$0xff]
  %v113 = vld [vmem:[%s1 + $0x270] sm:$0xff]
  %v114 = vld [vmem:[%s1 + $0x278] sm:$0xff]
  %v115 = vld [vmem:[%s1 + $0x280] sm:$0xff]
  %v116 = vld [vmem:[%s1 + $0x288] sm:$0xff]
  %v117 = vld [vmem:[%s1 + $0x290] sm:$0xff]
  %v118 = vld [vmem:[%s1 + $0x298] sm:$0xff]
  %v119 = vld [vmem:[%s1 + $0x2a0] sm:$0xff]
  %v120 = vld [vmem:[%s1 + $0x2a8] sm:$0xff]
  %v121 = vld [vmem:[%s1 + $0x2b0] sm:$0xff]
  %v122 = vld [vmem:[%s1 + $0x2b8] sm:$0xff]
  %v123 = vld [vmem:[%s1 + $0x2c0] sm:$0xff]
  %v124 = vld [vmem:[%s1 + $0x2c8] sm:$0xff]
  %v125 = vld [vmem:[%s1 + $0x2d0] sm:$0xff]
  %v126 = vld [vmem:[%s1 + $0x2d8] sm:$0xff]
  %v127 = vld [vmem:[%s1 + $0x2e0] sm:$0xff]
  %v128 = vld [vmem:[%s1 + $0x2e8] sm:$0xff]
  %v129 = vld [vmem:[%s1 + $0x2f0] sm:$0xff]
  %v130 = vld [vmem:[%s1 + $0x2f8] sm:$0xff]
  %v131 = vld [vmem:[%s1 + $0x300] sm:$0xff]
  %v132 = vld [vmem:[%s1 + $0x308] sm:$0xff]
  %v133 = vld [vmem:[%s1 + $0x310] sm:$0xff]
  %v134 = vld [vmem:[%s1 + $0x318] sm:$0xff]
  %v135 = vld [vmem:[%s2] sm:$0x3]
  %v137 = vperm.slane %v135, 0
  %v138 = vperm.slane %v135, 1
  %v241 = vunpack.c.l.b16 %v35
  %v242 = vunpack.c.h.b16 %v35
  %v243 = vunpack.c.l.b16 %v36
  %v244 = vunpack.c.h.b16 %v36
  %v245 = vunpack.c.l.b16 %v37
  %v246 = vunpack.c.h.b16 %v37
  %v247 = vunpack.c.l.b16 %v38
  %v248 = vunpack.c.h.b16 %v38
  %v249 = vunpack.c.l.b16 %v39
  %v250 = vunpack.c.h.b16 %v39
  %v251 = vunpack.c.l.b16 %v40
  %v252 = vunpack.c.h.b16 %v40
  %v253 = vunpack.c.l.b16 %v41
  %v254 = vunpack.c.h.b16 %v41
  %v255 = vunpack.c.l.b16 %v42
  %v256 = vunpack.c.h.b16 %v42
  %v257 = vunpack.c.l.b16 %v43
  %v258 = vunpack.c.h.b16 %v43
  %v259 = vunpack.c.l.b16 %v44
  %v260 = vunpack.c.h.b16 %v44
  %v261 = vunpack.c.l.b16 %v45
  %v262 = vunpack.c.h.b16 %v45
  %v263 = vunpack.c.l.b16 %v46
  %v264 = vunpack.c.h.b16 %v46
  %v265 = vunpack.c.l.b16 %v47
  %v266 = vunpack.c.h.b16 %v47
  %v267 = vunpack.c.l.b16 %v48
  %v268 = vunpack.c.h.b16 %v48
  %v269 = vunpack.c.l.b16 %v49
  %v270 = vunpack.c.h.b16 %v49
  %v271 = vunpack.c.l.b16 %v50
  %v272 = vunpack.c.h.b16 %v50
  %v273 = vunpack.c.l.b16 %v51
  %v274 = vunpack.c.h.b16 %v51
  %v275 = vunpack.c.l.b16 %v52
  %v276 = vunpack.c.h.b16 %v52
  %v277 = vunpack.c.l.b16 %v53
  %v278 = vunpack.c.h.b16 %v53
  %v279 = vunpack.c.l.b16 %v54
  %v280 = vunpack.c.h.b16 %v54
  %v281 = vunpack.c.l.b16 %v55
  %v282 = vunpack.c.h.b16 %v55
  %v283 = vunpack.c.l.b16 %v56
  %v284 = vunpack.c.h.b16 %v56
  %v285 = vunpack.c.l.b16 %v57
  %v286 = vunpack.c.h.b16 %v57
  %v287 = vunpack.c.l.b16 %v58
  %v288 = vunpack.c.h.b16 %v58
  %v289 = vunpack.c.l.b16 %v59
  %v290 = vunpack.c.h.b16 %v59
  %v291 = vunpack.c.l.b16 %v60
  %v292 = vunpack.c.h.b16 %v60
  %v293 = vunpack.c.l.b16 %v61
  %v294 = vunpack.c.h.b16 %v61
  %v295 = vunpack.c.l.b16 %v62
  %v296 = vunpack.c.h.b16 %v62
  %v297 = vunpack.c.l.b16 %v63
  %v298 = vunpack.c.h.b16 %v63
  %v299 = vunpack.c.l.b16 %v64
  %v300 = vunpack.c.h.b16 %v64
  %v301 = vunpack.c.l.b16 %v65
  %v302 = vunpack.c.h.b16 %v65
  %v303 = vunpack.c.l.b16 %v66
  %v304 = vunpack.c.h.b16 %v66
  %v305 = vunpack.c.l.b16 %v67
  %v306 = vunpack.c.h.b16 %v67
  %v307 = vunpack.c.l.b16 %v68
  %v308 = vunpack.c.h.b16 %v68
  %v309 = vunpack.c.l.b16 %v69
  %v310 = vunpack.c.h.b16 %v69
  %v311 = vunpack.c.l.b16 %v70
  %v312 = vunpack.c.h.b16 %v70
  %v313 = vunpack.c.l.b16 %v71
  %v314 = vunpack.c.h.b16 %v71
  %v315 = vunpack.c.l.b16 %v72
  %v316 = vunpack.c.h.b16 %v72
  %v317 = vunpack.c.l.b16 %v73
  %v318 = vunpack.c.h.b16 %v73
  %v319 = vunpack.c.l.b16 %v74
  %v320 = vunpack.c.h.b16 %v74
  %v321 = vunpack.c.l.b16 %v75
  %v322 = vunpack.c.h.b16 %v75
  %v323 = vunpack.c.l.b16 %v76
  %v324 = vunpack.c.h.b16 %v76
  %v325 = vunpack.c.l.b16 %v77
  %v326 = vunpack.c.h.b16 %v77
  %v327 = vunpack.c.l.b16 %v78
  %v328 = vunpack.c.h.b16 %v78
  %v329 = vunpack.c.l.b16 %v79
  %v330 = vunpack.c.h.b16 %v79
  %v331 = vunpack.c.l.b16 %v80
  %v332 = vunpack.c.h.b16 %v80
  %v333 = vunpack.c.l.b16 %v81
  %v334 = vunpack.c.h.b16 %v81
  %v335 = vunpack.c.l.b16 %v82
  %v336 = vunpack.c.h.b16 %v82
  %v337 = vunpack.c.l.b16 %v83
  %v338 = vunpack.c.h.b16 %v83
  %v339 = vunpack.c.l.b16 %v84
  %v340 = vunpack.c.h.b16 %v84
  %v341 = vunpack.c.l.b16 %v85
  %v342 = vunpack.c.h.b16 %v85
  %v343 = vunpack.c.l.b16 %v86
  %v344 = vunpack.c.h.b16 %v86
  %v345 = vunpack.c.l.b16 %v87
  %v346 = vunpack.c.h.b16 %v87
  %v347 = vunpack.c.l.b16 %v88
  %v348 = vunpack.c.h.b16 %v88
  %v349 = vunpack.c.l.b16 %v89
  %v350 = vunpack.c.h.b16 %v89
  %v351 = vunpack.c.l.b16 %v90
  %v352 = vunpack.c.h.b16 %v90
  %v353 = vunpack.c.l.b16 %v91
  %v354 = vunpack.c.h.b16 %v91
  %v355 = vunpack.c.l.b16 %v92
  %v356 = vunpack.c.h.b16 %v92
  %v357 = vunpack.c.l.b16 %v93
  %v358 = vunpack.c.h.b16 %v93
  %v359 = vunpack.c.l.b16 %v94
  %v360 = vunpack.c.h.b16 %v94
  %v361 = vunpack.c.l.b16 %v95
  %v362 = vunpack.c.h.b16 %v95
  %v363 = vunpack.c.l.b16 %v96
  %v364 = vunpack.c.h.b16 %v96
  %v365 = vunpack.c.l.b16 %v97
  %v366 = vunpack.c.h.b16 %v97
  %v367 = vunpack.c.l.b16 %v98
  %v368 = vunpack.c.h.b16 %v98
  %v369 = vunpack.c.l.b16 %v99
  %v370 = vunpack.c.h.b16 %v99
  %v371 = vunpack.c.l.b16 %v100
  %v372 = vunpack.c.h.b16 %v100
  %v373 = vunpack.c.l.b16 %v101
  %v374 = vunpack.c.h.b16 %v101
  %v375 = vunpack.c.l.b16 %v102
  %v376 = vunpack.c.h.b16 %v102
  %v377 = vunpack.c.l.b16 %v103
  %v378 = vunpack.c.h.b16 %v103
  %v379 = vunpack.c.l.b16 %v104
  %v380 = vunpack.c.h.b16 %v104
  %v381 = vunpack.c.l.b16 %v105
  %v382 = vunpack.c.h.b16 %v105
  %v383 = vunpack.c.l.b16 %v106
  %v384 = vunpack.c.h.b16 %v106
  %v385 = vunpack.c.l.b16 %v107
  %v386 = vunpack.c.h.b16 %v107
  %v387 = vunpack.c.l.b16 %v108
  %v388 = vunpack.c.h.b16 %v108
  %v389 = vunpack.c.l.b16 %v109
  %v390 = vunpack.c.h.b16 %v109
  %v391 = vunpack.c.l.b16 %v110
  %v392 = vunpack.c.h.b16 %v110
  %v393 = vunpack.c.l.b16 %v111
  %v394 = vunpack.c.h.b16 %v111
  %v395 = vunpack.c.l.b16 %v112
  %v396 = vunpack.c.h.b16 %v112
  %v397 = vunpack.c.l.b16 %v113
  %v398 = vunpack.c.h.b16 %v113
  %v399 = vunpack.c.l.b16 %v114
  %v400 = vunpack.c.h.b16 %v114
  %v401 = vunpack.c.l.b16 %v115
  %v402 = vunpack.c.h.b16 %v115
  %v403 = vunpack.c.l.b16 %v116
  %v404 = vunpack.c.h.b16 %v116
  %v405 = vunpack.c.l.b16 %v117
  %v406 = vunpack.c.h.b16 %v117
  %v407 = vunpack.c.l.b16 %v118
  %v408 = vunpack.c.h.b16 %v118
  %v409 = vunpack.c.l.b16 %v119
  %v410 = vunpack.c.h.b16 %v119
  %v411 = vunpack.c.l.b16 %v120
  %v412 = vunpack.c.h.b16 %v120
  %v413 = vunpack.c.l.b16 %v121
  %v414 = vunpack.c.h.b16 %v121
  %v415 = vunpack.c.l.b16 %v122
  %v416 = vunpack.c.h.b16 %v122
  %v417 = vunpack.c.l.b16 %v123
  %v418 = vunpack.c.h.b16 %v123
  %v419 = vunpack.c.l.b16 %v124
  %v420 = vunpack.c.h.b16 %v124
  %v421 = vunpack.c.l.b16 %v125
  %v422 = vunpack.c.h.b16 %v125
  %v423 = vunpack.c.l.b16 %v126
  %v424 = vunpack.c.h.b16 %v126
  %v425 = vunpack.c.l.b16 %v127
  %v426 = vunpack.c.h.b16 %v127
  %v427 = vunpack.c.l.b16 %v128
  %v428 = vunpack.c.h.b16 %v128
  %v429 = vunpack.c.l.b16 %v129
  %v430 = vunpack.c.h.b16 %v129
  %v431 = vunpack.c.l.b16 %v130
  %v432 = vunpack.c.h.b16 %v130
  %v433 = vunpack.c.l.b16 %v131
  %v434 = vunpack.c.h.b16 %v131
  %v435 = vunpack.c.l.b16 %v132
  %v436 = vunpack.c.h.b16 %v132
  %v437 = vunpack.c.l.b16 %v133
  %v438 = vunpack.c.h.b16 %v133
  %v439 = vunpack.c.l.b16 %v134
  %v440 = vunpack.c.h.b16 %v134
  %v441 = vpack.c.b16 %v243, %v241
  %v442 = vpack.c.b16 %v244, %v242
  %v443 = vpack.c.b16 %v247, %v245
  %v444 = vpack.c.b16 %v248, %v246
  %v445 = vpack.c.b16 %v251, %v249
  %v446 = vpack.c.b16 %v252, %v250
  %v447 = vpack.c.b16 %v255, %v253
  %v448 = vpack.c.b16 %v256, %v254
  %v449 = vpack.c.b16 %v259, %v257
  %v450 = vpack.c.b16 %v260, %v258
  %v451 = vpack.c.b16 %v263, %v261
  %v452 = vpack.c.b16 %v264, %v262
  %v453 = vpack.c.b16 %v267, %v265
  %v454 = vpack.c.b16 %v268, %v266
  %v455 = vpack.c.b16 %v271, %v269
  %v456 = vpack.c.b16 %v272, %v270
  %v457 = vpack.c.b16 %v275, %v273
  %v458 = vpack.c.b16 %v276, %v274
  %v459 = vpack.c.b16 %v279, %v277
  %v460 = vpack.c.b16 %v280, %v278
  %v461 = vpack.c.b16 %v283, %v281
  %v462 = vpack.c.b16 %v284, %v282
  %v463 = vpack.c.b16 %v287, %v285
  %v464 = vpack.c.b16 %v288, %v286
  %v465 = vpack.c.b16 %v291, %v289
  %v466 = vpack.c.b16 %v292, %v290
  %v467 = vpack.c.b16 %v295, %v293
  %v468 = vpack.c.b16 %v296, %v294
  %v469 = vpack.c.b16 %v299, %v297
  %v470 = vpack.c.b16 %v300, %v298
  %v471 = vpack.c.b16 %v303, %v301
  %v472 = vpack.c.b16 %v304, %v302
  %v473 = vpack.c.b16 %v307, %v305
  %v474 = vpack.c.b16 %v308, %v306
  %v475 = vpack.c.b16 %v311, %v309
  %v476 = vpack.c.b16 %v312, %v310
  %v477 = vpack.c.b16 %v315, %v313
  %v478 = vpack.c.b16 %v316, %v314
  %v479 = vpack.c.b16 %v319, %v317
  %v480 = vpack.c.b16 %v320, %v318
  %v481 = vpack.c.b16 %v323, %v321
  %v482 = vpack.c.b16 %v324, %v322
  %v483 = vpack.c.b16 %v327, %v325
  %v484 = vpack.c.b16 %v328, %v326
  %v485 = vpack.c.b16 %v331, %v329
  %v486 = vpack.c.b16 %v332, %v330
  %v487 = vpack.c.b16 %v335, %v333
  %v488 = vpack.c.b16 %v336, %v334
  %v489 = vpack.c.b16 %v339, %v337
  %v490 = vpack.c.b16 %v340, %v338
  %v491 = vpack.c.b16 %v343, %v341
  %v492 = vpack.c.b16 %v344, %v342
  %v493 = vpack.c.b16 %v347, %v345
  %v494 = vpack.c.b16 %v348, %v346
  %v495 = vpack.c.b16 %v351, %v349
  %v496 = vpack.c.b16 %v352, %v350
  %v497 = vpack.c.b16 %v355, %v353
  %v498 = vpack.c.b16 %v356, %v354
  %v499 = vpack.c.b16 %v359, %v357
  %v500 = vpack.c.b16 %v360, %v358
  %v501 = vpack.c.b16 %v363, %v361
  %v502 = vpack.c.b16 %v364, %v362
  %v503 = vpack.c.b16 %v367, %v365
  %v504 = vpack.c.b16 %v368, %v366
  %v505 = vpack.c.b16 %v371, %v369
  %v506 = vpack.c.b16 %v372, %v370
  %v507 = vpack.c.b16 %v375, %v373
  %v508 = vpack.c.b16 %v376, %v374
  %v509 = vpack.c.b16 %v379, %v377
  %v510 = vpack.c.b16 %v380, %v378
  %v511 = vpack.c.b16 %v383, %v381
  %v512 = vpack.c.b16 %v384, %v382
  %v513 = vpack.c.b16 %v387, %v385
  %v514 = vpack.c.b16 %v388, %v386
  %v515 = vpack.c.b16 %v391, %v389
  %v516 = vpack.c.b16 %v392, %v390
  %v517 = vpack.c.b16 %v395, %v393
  %v518 = vpack.c.b16 %v396, %v394
  %v519 = vpack.c.b16 %v399, %v397
  %v520 = vpack.c.b16 %v400, %v398
  %v521 = vpack.c.b16 %v403, %v401
  %v522 = vpack.c.b16 %v404, %v402
  %v523 = vpack.c.b16 %v407, %v405
  %v524 = vpack.c.b16 %v408, %v406
  %v525 = vpack.c.b16 %v411, %v409
  %v526 = vpack.c.b16 %v412, %v410
  %v527 = vpack.c.b16 %v415, %v413
  %v528 = vpack.c.b16 %v416, %v414
  %v529 = vpack.c.b16 %v419, %v417
  %v530 = vpack.c.b16 %v420, %v418
  %v531 = vpack.c.b16 %v423, %v421
  %v532 = vpack.c.b16 %v424, %v422
  %v533 = vpack.c.b16 %v427, %v425
  %v534 = vpack.c.b16 %v428, %v426
  %v535 = vpack.c.b16 %v431, %v429
  %v536 = vpack.c.b16 %v432, %v430
  %v537 = vpack.c.b16 %v435, %v433
  %v538 = vpack.c.b16 %v436, %v434
  %v539 = vpack.c.b16 %v439, %v437
  %v540 = vpack.c.b16 %v440, %v438
  %vm641 = vcmask 261120
  %v643 = vsel %vm641, %v34, 0
  %645 = vmatpush.bf16.msra.mxu0 %v455
  %646 = vmatpush.bf16.msra.mxu0 %v453
  %647 = vmatpush.bf16.msra.mxu0 %v451
  %648 = vmatpush.bf16.msra.mxu0 %v449
  %649 = vmatpush.bf16.msra.mxu0 %v447
  %650 = vmatpush.bf16.msra.mxu0 %v445
  %651 = vmatpush.bf16.msra.mxu0 %v443
  %652 = vmatpush.bf16.msra.mxu0 %v441
  %653 = vmatmul.bf16.gmra.mxu0 %v28
  %v654 = vpop.f32.mrf.mxu0
  %v655 = vadd.f32 %v137, %v654
  %v656 = vpop.f32.mrf.mxu0
  %657 = vdwg.mxu0
  %658 = vmatpush.bf16.msra.mxu0 %v471
  %659 = vmatpush.bf16.msra.mxu0 %v469
  %660 = vmatpush.bf16.msra.mxu0 %v467
  %661 = vmatpush.bf16.msra.mxu0 %v465
  %662 = vmatpush.bf16.msra.mxu0 %v463
  %663 = vmatpush.bf16.msra.mxu0 %v461
  %664 = vmatpush.bf16.msra.mxu0 %v459
  %665 = vmatpush.bf16.msra.mxu0 %v457
  %666 = vmatmul.bf16.gmra.mxu0 %v29
  %v667 = vpop.f32.mrf.mxu0
  %v668 = vadd.f32 %v655, %v667
  %v669 = vpop.f32.mrf.mxu0
  %670 = vdwg.mxu0
  %671 = vmatpush.bf16.msra.mxu0 %v487
  %672 = vmatpush.bf16.msra.mxu0 %v485
  %673 = vmatpush.bf16.msra.mxu0 %v483
  %674 = vmatpush.bf16.msra.mxu0 %v481
  %675 = vmatpush.bf16.msra.mxu0 %v479
  %676 = vmatpush.bf16.msra.mxu0 %v477
  %677 = vmatpush.bf16.msra.mxu0 %v475
  %678 = vmatpush.bf16.msra.mxu0 %v473
  %679 = vmatmul.bf16.gmra.mxu0 %v30
  %v680 = vpop.f32.mrf.mxu0
  %v681 = vadd.f32 %v668, %v680
  %v682 = vpop.f32.mrf.mxu0
  %683 = vdwg.mxu0
  %684 = vmatpush.bf16.msra.mxu0 %v503
  %685 = vmatpush.bf16.msra.mxu0 %v501
  %686 = vmatpush.bf16.msra.mxu0 %v499
  %687 = vmatpush.bf16.msra.mxu0 %v497
  %688 = vmatpush.bf16.msra.mxu0 %v495
  %689 = vmatpush.bf16.msra.mxu0 %v493
  %690 = vmatpush.bf16.msra.mxu0 %v491
  %691 = vmatpush.bf16.msra.mxu0 %v489
  %692 = vmatmul.bf16.gmra.mxu0 %v31
  %v693 = vpop.f32.mrf.mxu0
  %v694 = vadd.f32 %v681, %v693
  %v695 = vpop.f32.mrf.mxu0
  %696 = vdwg.mxu0
  %697 = vmatpush.bf16.msra.mxu0 %v519
  %698 = vmatpush.bf16.msra.mxu0 %v517
  %699 = vmatpush.bf16.msra.mxu0 %v515
  %700 = vmatpush.bf16.msra.mxu0 %v513
  %701 = vmatpush.bf16.msra.mxu0 %v511
  %702 = vmatpush.bf16.msra.mxu0 %v509
  %703 = vmatpush.bf16.msra.mxu0 %v507
  %704 = vmatpush.bf16.msra.mxu0 %v505
  %705 = vmatmul.bf16.gmra.mxu0 %v32
  %v706 = vpop.f32.mrf.mxu0
  %v707 = vadd.f32 %v694, %v706
  %v708 = vpop.f32.mrf.mxu0
  %709 = vdwg.mxu0
  %710 = vmatpush.bf16.msra.mxu0 %v535
  %711 = vmatpush.bf16.msra.mxu0 %v533
  %712 = vmatpush.bf16.msra.mxu0 %v531
  %713 = vmatpush.bf16.msra.mxu0 %v529
  %714 = vmatpush.bf16.msra.mxu0 %v527
  %715 = vmatpush.bf16.msra.mxu0 %v525
  %716 = vmatpush.bf16.msra.mxu0 %v523
  %717 = vmatpush.bf16.msra.mxu0 %v521
  %718 = vmatmul.bf16.gmra.mxu0 %v33
  %v719 = vpop.f32.mrf.mxu0
  %v720 = vadd.f32 %v707, %v719
  %v721 = vpop.f32.mrf.mxu0
  %722 = vdwg.mxu0
  %723 = vmatpush.bf16.msra.mxu0 0
  %724 = vmatpush.bf16.msra.mxu0 0
  %725 = vmatpush.bf16.msra.mxu0 0
  %726 = vmatpush.bf16.msra.mxu0 0
  %727 = vmatpush.bf16.msra.mxu0 0
  %728 = vmatpush.bf16.msra.mxu0 0
  %729 = vmatpush.bf16.msra.mxu0 %v539
  %730 = vmatpush.bf16.msra.mxu0 %v537
  %731 = vmatmul.bf16.gmra.mxu0 %v643
  %v732 = vpop.f32.mrf.mxu0
  %v733 = vadd.f32 %v720, %v732
  %v734 = vpop.f32.mrf.mxu0
  %735 = vdwg.mxu0
  %736 = vmatpush.bf16.msra.mxu0 %v456
  %737 = vmatpush.bf16.msra.mxu0 %v454
  %738 = vmatpush.bf16.msra.mxu0 %v452
  %739 = vmatpush.bf16.msra.mxu0 %v450
  %740 = vmatpush.bf16.msra.mxu0 %v448
  %741 = vmatpush.bf16.msra.mxu0 %v446
  %742 = vmatpush.bf16.msra.mxu0 %v444
  %743 = vmatpush.bf16.msra.mxu0 %v442
  %744 = vmatmul.bf16.gmra.mxu0 %v28
  %v745 = vpop.f32.mrf.mxu0
  %v746 = vadd.f32 %v138, %v745
  %v747 = vpop.f32.mrf.mxu0
  %748 = vdwg.mxu0
  %749 = vmatpush.bf16.msra.mxu0 %v472
  %750 = vmatpush.bf16.msra.mxu0 %v470
  %751 = vmatpush.bf16.msra.mxu0 %v468
  %752 = vmatpush.bf16.msra.mxu0 %v466
  %753 = vmatpush.bf16.msra.mxu0 %v464
  %754 = vmatpush.bf16.msra.mxu0 %v462
  %755 = vmatpush.bf16.msra.mxu0 %v460
  %756 = vmatpush.bf16.msra.mxu0 %v458
  %757 = vmatmul.bf16.gmra.mxu0 %v29
  %v758 = vpop.f32.mrf.mxu0
  %v759 = vadd.f32 %v746, %v758
  %v760 = vpop.f32.mrf.mxu0
  %761 = vdwg.mxu0
  %762 = vmatpush.bf16.msra.mxu0 %v488
  %763 = vmatpush.bf16.msra.mxu0 %v486
  %764 = vmatpush.bf16.msra.mxu0 %v484
  %765 = vmatpush.bf16.msra.mxu0 %v482
  %766 = vmatpush.bf16.msra.mxu0 %v480
  %767 = vmatpush.bf16.msra.mxu0 %v478
  %768 = vmatpush.bf16.msra.mxu0 %v476
  %769 = vmatpush.bf16.msra.mxu0 %v474
  %770 = vmatmul.bf16.gmra.mxu0 %v30
  %v771 = vpop.f32.mrf.mxu0
  %v772 = vadd.f32 %v759, %v771
  %v773 = vpop.f32.mrf.mxu0
  %774 = vdwg.mxu0
  %775 = vmatpush.bf16.msra.mxu0 %v504
  %776 = vmatpush.bf16.msra.mxu0 %v502
  %777 = vmatpush.bf16.msra.mxu0 %v500
  %778 = vmatpush.bf16.msra.mxu0 %v498
  %779 = vmatpush.bf16.msra.mxu0 %v496
  %780 = vmatpush.bf16.msra.mxu0 %v494
  %781 = vmatpush.bf16.msra.mxu0 %v492
  %782 = vmatpush.bf16.msra.mxu0 %v490
  %783 = vmatmul.bf16.gmra.mxu0 %v31
  %v784 = vpop.f32.mrf.mxu0
  %v785 = vadd.f32 %v772, %v784
  %v786 = vpop.f32.mrf.mxu0
  %787 = vdwg.mxu0
  %788 = vmatpush.bf16.msra.mxu0 %v520
  %789 = vmatpush.bf16.msra.mxu0 %v518
  %790 = vmatpush.bf16.msra.mxu0 %v516
  %791 = vmatpush.bf16.msra.mxu0 %v514
  %792 = vmatpush.bf16.msra.mxu0 %v512
  %793 = vmatpush.bf16.msra.mxu0 %v510
  %794 = vmatpush.bf16.msra.mxu0 %v508
  %795 = vmatpush.bf16.msra.mxu0 %v506
  %796 = vmatmul.bf16.gmra.mxu0 %v32
  %v797 = vpop.f32.mrf.mxu0
  %v798 = vadd.f32 %v785, %v797
  %v799 = vpop.f32.mrf.mxu0
  %800 = vdwg.mxu0
  %801 = vmatpush.bf16.msra.mxu0 %v536
  %802 = vmatpush.bf16.msra.mxu0 %v534
  %803 = vmatpush.bf16.msra.mxu0 %v532
  %804 = vmatpush.bf16.msra.mxu0 %v530
  %805 = vmatpush.bf16.msra.mxu0 %v528
  %806 = vmatpush.bf16.msra.mxu0 %v526
  %807 = vmatpush.bf16.msra.mxu0 %v524
  %808 = vmatpush.bf16.msra.mxu0 %v522
  %809 = vmatmul.bf16.gmra.mxu0 %v33
  %v810 = vpop.f32.mrf.mxu0
  %v811 = vadd.f32 %v798, %v810
  %v812 = vpop.f32.mrf.mxu0
  %813 = vdwg.mxu0
  %814 = vmatpush.bf16.msra.mxu0 0
  %815 = vmatpush.bf16.msra.mxu0 0
  %816 = vmatpush.bf16.msra.mxu0 0
  %817 = vmatpush.bf16.msra.mxu0 0
  %818 = vmatpush.bf16.msra.mxu0 0
  %819 = vmatpush.bf16.msra.mxu0 0
  %820 = vmatpush.bf16.msra.mxu0 %v540
  %821 = vmatpush.bf16.msra.mxu0 %v538
  %822 = vmatmul.bf16.gmra.mxu0 %v643
  %v823 = vpop.f32.mrf.mxu0
  %v824 = vadd.f32 %v811, %v823
  %v825 = vpop.f32.mrf.mxu0
  %826 = vdwg.mxu0
  %v827 = vmax.f32 %v733, 0.0
  %v828 = vmax.f32 %v824, 0.0
  %v829 = vpack.c.bf16 %v827, %v827
  %v830 = vpack.c.bf16 %v828, %v828
  %v831 = vld [vmem:[%s3] sm:$0xf]
  %v832 = vld [vmem:[%s3 + $0x4] sm:$0xf]
  %v833 = vld [vmem:[%s3 + $0x8] sm:$0xf]
  %v834 = vld [vmem:[%s3 + $0xc] sm:$0xf]
  %v835 = vld [vmem:[%s3 + $0x10] sm:$0xf]
  %v836 = vld [vmem:[%s3 + $0x14] sm:$0xf]
  %v837 = vld [vmem:[%s3 + $0x18] sm:$0xf]
  %v838 = vld [vmem:[%s3 + $0x1c] sm:$0xf]
  %v839 = vld [vmem:[%s3 + $0x20] sm:$0xf]
  %v840 = vld [vmem:[%s3 + $0x24] sm:$0xf]
  %v841 = vld [vmem:[%s3 + $0x28] sm:$0xf]
  %v842 = vld [vmem:[%s3 + $0x2c] sm:$0xf]
  %v843 = vld [vmem:[%s3 + $0x30] sm:$0xf]
  %v844 = vld [vmem:[%s3 + $0x34] sm:$0xf]
  %v845 = vld [vmem:[%s3 + $0x38] sm:$0xf]
  %v846 = vld [vmem:[%s3 + $0x3c] sm:$0xf]
  %v847 = vld [vmem:[%s3 + $0x40] sm:$0xf]
  %v848 = vld [vmem:[%s3 + $0x44] sm:$0xf]
  %v849 = vld [vmem:[%s3 + $0x48] sm:$0xf]
  %v850 = vld [vmem:[%s3 + $0x4c] sm:$0xf]
  %v851 = vld [vmem:[%s3 + $0x50] sm:$0xf]
  %v852 = vld [vmem:[%s3 + $0x54] sm:$0xf]
  %v853 = vld [vmem:[%s3 + $0x58] sm:$0xf]
  %v854 = vld [vmem:[%s3 + $0x5c] sm:$0xf]
  %v855 = vld [vmem:[%s3 + $0x60] sm:$0xf]
  %v856 = vld [vmem:[%s3 + $0x64] sm:$0xf]
  %v857 = vld [vmem:[%s3 + $0x68] sm:$0xf]
  %v858 = vld [vmem:[%s3 + $0x6c] sm:$0xf]
  %v859 = vld [vmem:[%s3 + $0x70] sm:$0xf]
  %v860 = vld [vmem:[%s3 + $0x74] sm:$0xf]
  %v861 = vld [vmem:[%s3 + $0x78] sm:$0xf]
  %v862 = vld [vmem:[%s3 + $0x7c] sm:$0xf]
  %v863 = vld [vmem:[%s4] sm:$0x1]
  %v865 = vperm.slane %v863, 0
  %v899 = vunpack.c.l.b16 %v831
  %v900 = vunpack.c.l.b16 %v832
  %v901 = vunpack.c.l.b16 %v833
  %v902 = vunpack.c.l.b16 %v834
  %v903 = vunpack.c.l.b16 %v835
  %v904 = vunpack.c.l.b16 %v836
  %v905 = vunpack.c.l.b16 %v837
  %v906 = vunpack.c.l.b16 %v838
  %v907 = vunpack.c.l.b16 %v839
  %v908 = vunpack.c.l.b16 %v840
  %v909 = vunpack.c.l.b16 %v841
  %v910 = vunpack.c.l.b16 %v842
  %v911 = vunpack.c.l.b16 %v843
  %v912 = vunpack.c.l.b16 %v844
  %v913 = vunpack.c.l.b16 %v845
  %v914 = vunpack.c.l.b16 %v846
  %v915 = vunpack.c.l.b16 %v847
  %v916 = vunpack.c.l.b16 %v848
  %v917 = vunpack.c.l.b16 %v849
  %v918 = vunpack.c.l.b16 %v850
  %v919 = vunpack.c.l.b16 %v851
  %v920 = vunpack.c.l.b16 %v852
  %v921 = vunpack.c.l.b16 %v853
  %v922 = vunpack.c.l.b16 %v854
  %v923 = vunpack.c.l.b16 %v855
  %v924 = vunpack.c.l.b16 %v856
  %v925 = vunpack.c.l.b16 %v857
  %v926 = vunpack.c.l.b16 %v858
  %v927 = vunpack.c.l.b16 %v859
  %v928 = vunpack.c.l.b16 %v860
  %v929 = vunpack.c.l.b16 %v861
  %v930 = vunpack.c.l.b16 %v862
  %v931 = vpack.c.b16 %v900, %v899
  %v932 = vpack.c.b16 %v902, %v901
  %v933 = vpack.c.b16 %v904, %v903
  %v934 = vpack.c.b16 %v906, %v905
  %v935 = vpack.c.b16 %v908, %v907
  %v936 = vpack.c.b16 %v910, %v909
  %v937 = vpack.c.b16 %v912, %v911
  %v938 = vpack.c.b16 %v914, %v913
  %v939 = vpack.c.b16 %v916, %v915
  %v940 = vpack.c.b16 %v918, %v917
  %v941 = vpack.c.b16 %v920, %v919
  %v942 = vpack.c.b16 %v922, %v921
  %v943 = vpack.c.b16 %v924, %v923
  %v944 = vpack.c.b16 %v926, %v925
  %v945 = vpack.c.b16 %v928, %v927
  %v946 = vpack.c.b16 %v930, %v929
  %963 = vmatpush.bf16.msra.mxu0 %v938
  %964 = vmatpush.bf16.msra.mxu0 %v937
  %965 = vmatpush.bf16.msra.mxu0 %v936
  %966 = vmatpush.bf16.msra.mxu0 %v935
  %967 = vmatpush.bf16.msra.mxu0 %v934
  %968 = vmatpush.bf16.msra.mxu0 %v933
  %969 = vmatpush.bf16.msra.mxu0 %v932
  %970 = vmatpush.bf16.msra.mxu0 %v931
  %971 = vmatmul.bf16.gmra.mxu0 %v829
  %v972 = vpop.f32.mrf.mxu0
  %v973 = vadd.f32 %v865, %v972
  %v974 = vpop.f32.mrf.mxu0
  %975 = vdwg.mxu0
  %976 = vmatpush.bf16.msra.mxu0 %v946
  %977 = vmatpush.bf16.msra.mxu0 %v945
  %978 = vmatpush.bf16.msra.mxu0 %v944
  %979 = vmatpush.bf16.msra.mxu0 %v943
  %980 = vmatpush.bf16.msra.mxu0 %v942
  %981 = vmatpush.bf16.msra.mxu0 %v941
  %982 = vmatpush.bf16.msra.mxu0 %v940
  %983 = vmatpush.bf16.msra.mxu0 %v939
  %984 = vmatmul.bf16.gmra.mxu0 %v830
  %v985 = vpop.f32.mrf.mxu0
  %v986 = vadd.f32 %v973, %v985
  %v987 = vpop.f32.mrf.mxu0
  %988 = vdwg.mxu0
  %989 = vmax.xlane.f32.xlu0 %v986
  %v990 = vpop.xlane.xlu0 %989
  %v991 = vsub.f32 %v986, %v990
  %v992 = vmul.f32 %v991, 1.442695
  %v993 = vpow.pop %v992
  %994 = vadd.xlane.f32.xlu0 %v993
  %v995 = vpop.xlane.xlu0 %994
  %v996 = vrcp.pop %v995
  %v997 = vmul.f32 %v995, %v996
  %v998 = vsub.f32 1.0, %v997
  %v999 = vmul.f32 %v996, %v998
  %v1000 = vadd.f32 %v996, %v999
  %vm1001 = vweird.f32 %v995
  %vm1002 = vweird.f32 %v996
  %vm1003 = vmor %vm1001, %vm1002
  %v1004 = vsel %vm1003, %v996, %v1000
  %v1005 = vand.u32 2147483647, %v995
  %vm1006 = vcmp.eq.f32.partialorder %v1005, 8.507059e+37
  %v1007 = vand.u32 %v995, 2147483648
  %v1008 = vor.u32 1.1754944e-38, %v1007
  %v1009 = vsel %vm1006, %v1008, %v1004
  %v1010 = vmul.f32 %v993, %v1009
  %vm1011 = vcmask 64512
  %1012 = vst.msk [vmem:[%s5] sm:$0xff] %vm1011, %v1010
  // Predicated region
  $region22: #{controller_forward.1} parent=0 // pred_check
    _
  $region23: #{controller_forward.1} parent=0 // pred_check_branch
    %1014 = sbr.rel (0) target = $region25
  $region24: #{controller_forward.1} parent=0 // pred_region
    _
  $region25: #{controller_forward.1} parent=0 // pred_fallthru
    _
  // Predicated region
  $region26: #{controller_forward.1} parent=0 // pred_check
    _
  $region27: #{controller_forward.1} parent=0 // pred_check_branch
    %1016 = sbr.rel (0) target = $region29
  $region28: #{controller_forward.1} parent=0 // pred_region
    _
  $region29: #{controller_forward.1} parent=0 // pred_fallthru
    _

</llo_original>
